<compile_context>
chip_gen: v7x
topology: tpu7x:2x2x1
jax: 0.10.0
libtpu: 0.0.40
codegen_flags: <defaults>
</compile_context>

<pallas_src>
import functools
import math

import jax
import jax.numpy as jnp
import numpy as np
from jax.experimental import pallas as pl
from jax.experimental.pallas import tpu as pltpu

# -------------------- module constants (from the PyTorch source) ------------
DH = 50            # conv output channels
DW = 300           # embedding dim / conv input channels
KERNEL_SIZE = 3
OUTPUT_SIZE = 4
PADDING = 1
STRIDE = 1
VOCAB = 20         # synthetic vocab for the pretrained-embedding table

DH_PAD = 128       # conv channels padded to a lane-dense 128
OUT_PAD = 128      # classifier output padded to a lane-dense 128


# -------------------------------- kernel ------------------------------------
def cnn_kernel(x_ref, wc_ref, bc_ref, wl_ref, bl_ref, out_ref, *, tb, L):
    """Fused conv1d (one im2col matmul) + bias + ReLU + length max-pool + linear.

    x_ref  : (tb*L, K*dw)       im2col'd channels-last activations (f32 or bf16)
    wc_ref : (K*dw, DH_PAD)     conv weight as one column matrix, dh zero-padded
    bc_ref : (1, DH_PAD)        conv bias (f32, zero-padded)
    wl_ref : (DH_PAD, OUT_PAD)  linear weight (padded)
    bl_ref : (1, OUT_PAD)       linear bias (f32, padded)
    out_ref: (tb, OUT_PAD)      lane-dense f32 output block
    """
    # Single MXU matmul for the whole conv over tb batch elements.
    acc = jnp.dot(x_ref[...], wc_ref[...],
                  preferred_element_type=jnp.float32)        # (tb*L, DH_PAD) f32
    acc = jnp.maximum(acc + bc_ref[...], 0.0)                # bias + ReLU (f32)

    # max_pool1d over the full sequence length, per batch element.
    # (L = 8 in the demo -> the reshape stays on sublane-group boundaries.)
    pooled = jnp.max(acc.reshape(tb, L, DH_PAD), axis=1)     # (tb, DH_PAD) f32

    # Final linear on the padded 128-wide channel dim; pad rows of wl are zero.
    out_ref[...] = (jnp.dot(pooled.astype(wl_ref.dtype), wl_ref[...],
                            preferred_element_type=jnp.float32)
                    + bl_ref[...])                           # (tb, OUT_PAD)


# ------------------------------- wrapper ------------------------------------
def _pick_tb(B, L, bytes_per_elem):
    """Batch elements per grid step.

    Target ~1024 MXU rows per step (amortizes per-step pipeline overhead),
    capped so the (tb*L, K*dw) activation block stays <= ~8 MiB (comfortable
    double-buffering headroom even at the v7x 32 MiB scoped-VMEM default).
    """
    row_bytes = KERNEL_SIZE * DW * bytes_per_elem
    max_rows = max(8, (8 * 1024 * 1024) // row_bytes)        # VMEM-aware cap
    target_rows = min(1024, max_rows)
    tb = max(1, target_rows // L)
    if tb >= B:
        return B                       # single grid step; block dims == full dims
    return max(8, (tb // 8) * 8)       # multi-step: keep block row dims 8-aligned


def my_cnn_forward(tokens, emb_w, conv_w, conv_b, lin_w, lin_b,
                   *, compute_dtype=jnp.float32):
    B, L = tokens.shape
    dw = emb_w.shape[1]
    dh, _, K = conv_w.shape
    out_dim = lin_w.shape[0]

    tb = _pick_tb(B, L, jnp.dtype(compute_dtype).itemsize)
    B_pad = math.ceil(B / tb) * tb
    grid = B_pad // tb

    tokens_p = jnp.pad(tokens, ((0, B_pad - B), (0, 0)))      # pad with token 0

    # --- glue (plain JAX, fused by XLA under jit) ---
    e = jnp.take(emb_w, tokens_p, axis=0)                     # (B_pad, L, dw)
    xv = e.reshape(B_pad, dw, L)                              # PyTorch x.view(B, dw, L)
    xt = jnp.transpose(xv, (0, 2, 1))                         # channels-last (B_pad, L, dw)
    xpad = jnp.pad(xt, ((0, 0), (PADDING, PADDING), (0, 0)))  # conv padding along L
    # im2col: lhs[b, t, k*dw + c] = xpad[b, t + k, c]
    lhs = jnp.concatenate([xpad[:, k:k + L, :] for k in range(K)], axis=-1)
    lhs = lhs.reshape(B_pad * L, K * dw).astype(compute_dtype)

    # --- weight re-layout: one (K*dw, dh) column matrix, padded to 128 lanes ---
    wcol = jnp.transpose(conv_w, (2, 1, 0)).reshape(K * dw, dh)      # [k*dw+c, o] = conv_w[o,c,k]
    wcol = jnp.pad(wcol, ((0, 0), (0, DH_PAD - dh))).astype(compute_dtype)
    bc = jnp.pad(conv_b, (0, DH_PAD - dh)).reshape(1, DH_PAD).astype(jnp.float32)
    wlt = jnp.pad(lin_w.T, ((0, DH_PAD - dh), (0, OUT_PAD - out_dim))
                  ).astype(compute_dtype)                            # (DH_PAD, OUT_PAD)
    bl = jnp.pad(lin_b, (0, OUT_PAD - out_dim)).reshape(1, OUT_PAD).astype(jnp.float32)

    kernel = functools.partial(cnn_kernel, tb=tb, L=L)

    out = pl.pallas_call(
        kernel,
        out_shape=jax.ShapeDtypeStruct((B_pad, OUT_PAD), jnp.float32),
        grid=(grid,),
        in_specs=[
            pl.BlockSpec((tb * L, K * dw), lambda i: (i, 0)),        # activations
            pl.BlockSpec((K * dw, DH_PAD), lambda i: (0, 0)),        # conv weight (revisited)
            pl.BlockSpec((1, DH_PAD), lambda i: (0, 0)),             # conv bias
            pl.BlockSpec((DH_PAD, OUT_PAD), lambda i: (0, 0)),       # linear weight
            pl.BlockSpec((1, OUT_PAD), lambda i: (0, 0)),            # linear bias
        ],
        out_specs=pl.BlockSpec((tb, OUT_PAD), lambda i: (i, 0)),     # lane-dense output
        compiler_params=pltpu.CompilerParams(
            dimension_semantics=("parallel",)),
    )(lhs, wcol, bc, wlt, bl)

    return out[:B, :out_dim]


# ----------------------- pure-JAX reference (for checking) ------------------
def ref_forward(tokens, emb_w, conv_w, conv_b, lin_w, lin_b):
    B, L = tokens.shape
    dw = emb_w.shape[1]
    e = emb_w[tokens]                                        # (B, L, dw)
    xv = e.reshape(B, dw, L)                                 # the buggy-looking .view
    xp = jnp.pad(xv, ((0, 0), (0, 0), (PADDING, PADDING)))   # (B, dw, L+2)
    hp = jax.lax.Precision.HIGHEST
    cols = [jnp.einsum('ock,bck->bo', conv_w, xp[:, :, t:t + KERNEL_SIZE],
                       precision=hp)
            for t in range(L)]
    conv = jnp.stack(cols, axis=-1) + conv_b[None, :, None]  # (B, dh, L)
    r = jnp.maximum(conv, 0.0)
    pooled = r.max(axis=2)                                   # (B, dh)
    return jnp.dot(pooled, lin_w.T, precision=hp) + lin_b


# --------------------------------- main --------------------------------------
if __name__ == "__main__":
    key = jax.random.PRNGKey(0)
    k_emb, k_cw, k_cb, k_lw, k_lb, k_tok = jax.random.split(key, 6)

    # deterministic synthetic parameters (stand-in for weights.pickle)
    # NB: in the original, the 2nd positional arg of from_pretrained is `freeze`,
    #     so padding_idx has no effect on the forward pass.
    emb_w = jax.random.normal(k_emb, (VOCAB, DW), jnp.float32) * 0.1
    conv_w = jax.random.normal(k_cw, (DH, DW, KERNEL_SIZE), jnp.float32) * 0.05
    conv_b = jax.random.normal(k_cb, (DH,), jnp.float32) * 0.05
    lin_w = jax.random.normal(k_lw, (OUTPUT_SIZE, DH), jnp.float32) * 0.05
    lin_b = jax.random.normal(k_lb, (OUTPUT_SIZE,), jnp.float32) * 0.05

    B, L = 2, 8
    tokens = jax.random.randint(k_tok, (B, L), 0, VOCAB, dtype=jnp.int32)

    y_ref = ref_forward(tokens, emb_w, conv_w, conv_b, lin_w, lin_b)

    # f32 path (exact semantics of the PyTorch module)
    fwd_f32 = jax.jit(functools.partial(my_cnn_forward, compute_dtype=jnp.float32))
    y32 = jax.block_until_ready(fwd_f32(tokens, emb_w, conv_w, conv_b, lin_w, lin_b))
    np.testing.assert_allclose(np.asarray(y32), np.asarray(y_ref),
                               rtol=1e-3, atol=1e-4)
    assert y32.shape == (B, OUTPUT_SIZE) and y32.dtype == jnp.float32

    # bf16-in / f32-accumulate path (v6e/v7x MXU-rate optimization)
    fwd_bf16 = jax.jit(functools.partial(my_cnn_forward, compute_dtype=jnp.bfloat16))
    y16 = jax.block_until_ready(fwd_bf16(tokens, emb_w, conv_w, conv_b, lin_w, lin_b))
    np.testing.assert_allclose(np.asarray(y16), np.asarray(y_ref),
                               rtol=5e-2, atol=5e-3)

    # exercise a multi-step grid (B > tb) to check the tiled / padded path too
    B2 = 300
    tokens2 = jax.random.randint(jax.random.PRNGKey(1), (B2, L), 0, VOCAB,
                                 dtype=jnp.int32)
    y2 = jax.block_until_ready(fwd_f32(tokens2, emb_w, conv_w, conv_b, lin_w, lin_b))
    y2_ref = ref_forward(tokens2, emb_w, conv_w, conv_b, lin_w, lin_b)
    np.testing.assert_allclose(np.asarray(y2), np.asarray(y2_ref),
                               rtol=1e-3, atol=1e-4)

    print("KERNEL_OK")
</pallas_src>

<mosaic_0001>
module attributes {stable_mosaic.version = 11 : i64} {
  func.func @cnn_kernel(%arg0: i32, %arg1: memref<16x900xf32, #tpu.memory_space<vmem>>, %arg2: memref<900x128xf32, #tpu.memory_space<vmem>>, %arg3: memref<1x128xf32, #tpu.memory_space<vmem>>, %arg4: memref<128x128xf32, #tpu.memory_space<vmem>>, %arg5: memref<1x128xf32, #tpu.memory_space<vmem>>, %arg6: memref<2x128xf32, #tpu.memory_space<vmem>>) attributes {dimension_semantics = [#tpu.dimension_semantics<parallel>], iteration_bounds = array<i64: 1>, scalar_prefetch = 0 : i64, scratch_operands = 0 : i64, tpu.core_type = #tpu.core_type<tc>, window_params = [{transform_indices = @transform_0, window_bounds = array<i64: 16, 900>}, {pipeline_mode = #tpu.pipeline_mode<synchronous>, transform_indices = @transform_1, window_bounds = array<i64: 900, 128>}, {pipeline_mode = #tpu.pipeline_mode<synchronous>, transform_indices = @transform_2, window_bounds = array<i64: 1, 128>}, {pipeline_mode = #tpu.pipeline_mode<synchronous>, transform_indices = @transform_3, window_bounds = array<i64: 128, 128>}, {pipeline_mode = #tpu.pipeline_mode<synchronous>, transform_indices = @transform_4, window_bounds = array<i64: 1, 128>}, {transform_indices = @transform_5, window_bounds = array<i64: 2, 128>}]} {
    %c0 = arith.constant 0 : index
    %c0_0 = arith.constant 0 : index
    %0 = vector.load %arg1[%c0, %c0_0] : memref<16x900xf32, #tpu.memory_space<vmem>>, vector<16x900xf32>
    %c0_1 = arith.constant 0 : index
    %c0_2 = arith.constant 0 : index
    %1 = vector.load %arg2[%c0_1, %c0_2] : memref<900x128xf32, #tpu.memory_space<vmem>>, vector<900x128xf32>
    %cst = arith.constant dense<0.000000e+00> : vector<16x128xf32>
    %2 = tpu.matmul %0, %1, %cst {dimension_numbers = #tpu.dot_dimension_numbers<[1], [0], [0], [1], [0, 0, 1, 1], [], []>} : vector<16x900xf32>, vector<900x128xf32>, vector<16x128xf32> -> vector<16x128xf32>
    %c0_3 = arith.constant 0 : index
    %c0_4 = arith.constant 0 : index
    %3 = vector.load %arg3[%c0_3, %c0_4] : memref<1x128xf32, #tpu.memory_space<vmem>>, vector<1x128xf32>
    %4 = vector.broadcast %3 : vector<1x128xf32> to vector<16x128xf32>
    %5 = arith.addf %2, %4 : vector<16x128xf32>
    %cst_5 = arith.constant 0.000000e+00 : f32
    %6 = vector.broadcast %cst_5 : f32 to vector<16x128xf32>
    %7 = arith.maximumf %5, %6 : vector<16x128xf32>
    %8 = vector.shape_cast %7 : vector<16x128xf32> to vector<2x8x128xf32>
    %cst_6 = arith.constant dense<0xFF800000> : vector<2x128xf32>
    %9 = vector.multi_reduction <maximumf>, %8, %cst_6 [1] : vector<2x8x128xf32> to vector<2x128xf32>
    %c0_7 = arith.constant 0 : index
    %c0_8 = arith.constant 0 : index
    %10 = vector.load %arg4[%c0_7, %c0_8] : memref<128x128xf32, #tpu.memory_space<vmem>>, vector<128x128xf32>
    %cst_9 = arith.constant dense<0.000000e+00> : vector<2x128xf32>
    %11 = tpu.matmul %9, %10, %cst_9 {dimension_numbers = #tpu.dot_dimension_numbers<[1], [0], [0], [1], [0, 0, 1, 1], [], []>} : vector<2x128xf32>, vector<128x128xf32>, vector<2x128xf32> -> vector<2x128xf32>
    %c0_10 = arith.constant 0 : index
    %c0_11 = arith.constant 0 : index
    %12 = vector.load %arg5[%c0_10, %c0_11] : memref<1x128xf32, #tpu.memory_space<vmem>>, vector<1x128xf32>
    %13 = vector.broadcast %12 : vector<1x128xf32> to vector<2x128xf32>
    %14 = arith.addf %11, %13 : vector<2x128xf32>
    %c0_12 = arith.constant 0 : index
    %c0_13 = arith.constant 0 : index
    %15 = vector.load %arg6[%c0_12, %c0_13] : memref<2x128xf32, #tpu.memory_space<vmem>>, vector<2x128xf32>
    tpu.vector_store %arg6[%c0_12, %c0_13], %14 {strides = array<i32>} : memref<2x128xf32, #tpu.memory_space<vmem>>, vector<2x128xf32>,
    return
  }
  func.func @transform_0(%arg0: i32) -> (i32, i32) {
    %c0_i32 = arith.constant 0 : i32
    %c0_i32_0 = arith.constant 0 : i32
    return %arg0, %c0_i32 : i32, i32
  }
  func.func @transform_1(%arg0: i32) -> (i32, i32) {
    %c0_i32 = arith.constant 0 : i32
    %c0_i32_0 = arith.constant 0 : i32
    %c0_i32_1 = arith.constant 0 : i32
    return %c0_i32, %c0_i32_0 : i32, i32
  }
  func.func @transform_2(%arg0: i32) -> (i32, i32) {
    %c0_i32 = arith.constant 0 : i32
    %c0_i32_0 = arith.constant 0 : i32
    %c0_i32_1 = arith.constant 0 : i32
    return %c0_i32, %c0_i32_0 : i32, i32
  }
  func.func @transform_3(%arg0: i32) -> (i32, i32) {
    %c0_i32 = arith.constant 0 : i32
    %c0_i32_0 = arith.constant 0 : i32
    %c0_i32_1 = arith.constant 0 : i32
    return %c0_i32, %c0_i32_0 : i32, i32
  }
  func.func @transform_4(%arg0: i32) -> (i32, i32) {
    %c0_i32 = arith.constant 0 : i32
    %c0_i32_0 = arith.constant 0 : i32
    %c0_i32_1 = arith.constant 0 : i32
    return %c0_i32, %c0_i32_0 : i32, i32
  }
  func.func @transform_5(%arg0: i32) -> (i32, i32) {
    %c0_i32 = arith.constant 0 : i32
    %c0_i32_0 = arith.constant 0 : i32
    return %arg0, %c0_i32 : i32, i32
  }
}

</mosaic_0001>

<llo_original>
// kernel: my_cnn_forward.1
$region0: #{my_cnn_forward.1}
  #allocation0 [shape = 'u32[]', space=smem, size = 0x4, offset = 0x4, fixed_abs, tag = 'smem constant byte address 0x4 - core index']
  #allocation1 [shape = 'u32[144,128]{1,0:T(1,128)}', space=vmem, size = 0x12000, scoped, tag = 'internal scratch']
  %s0 = inlined_call_operand.vmem [shape: f32[16,900], index: 0, kind: input, shape index: {}]
  %s1 = inlined_call_operand.vmem [shape: f32[900,128], index: 1, kind: input, shape index: {}]
  %s2 = inlined_call_operand.vmem [shape: f32[1,128], index: 2, kind: input, shape index: {}]
  %s3 = inlined_call_operand.vmem [shape: f32[128,128], index: 3, kind: input, shape index: {}]
  %s4 = inlined_call_operand.vmem [shape: f32[1,128], index: 4, kind: input, shape index: {}]
  %s5 = inlined_call_operand.hbm [shape: f32[2,128], index: 5, kind: output, shape index: {}]
  %s6 = sld [smem:[#allocation0]]
  $region30: #{my_cnn_forward.1} parent=0
    _
  %s8 = ssub.s32 1, %s6
  %s9 = scalar_select 0, %s8, %s6
  $region1: #{my_cnn_forward.1} parent=0
    #allocation2 [shape = 'u8[1024]{0}', space=vmem, size = 0x400, scoped, tag = 'output window, operand 0, single buffered']
    #allocation3 [shape = 's32[1]{0}', space=sflag, size = 0x4, scoped, tag = 'scoped memory for my_cnn_forward.1']
    %10 = vsyncpa [#allocation3], 0
    // Predicated region
    $region2: #{my_cnn_forward.1} parent=1 // pred_check
      _
    $region3: #{my_cnn_forward.1} parent=1 // pred_check_branch
      %12 = sbr.rel (0) target = $region5
    $region4: #{my_cnn_forward.1} parent=1 // pred_region
      _
    $region5: #{my_cnn_forward.1} parent=1 // pred_fallthru
      _
    // Predicated region
    $region6: #{my_cnn_forward.1} parent=1 // pred_check
      _
    $region7: #{my_cnn_forward.1} parent=1 // pred_check_branch
      %14 = sbr.rel (0) target = $region9
    $region8: #{my_cnn_forward.1} parent=1 // pred_region
      _
    $region9: #{my_cnn_forward.1} parent=1 // pred_fallthru
      _
    // Predicated region
    $region10: #{my_cnn_forward.1} parent=1 // pred_check
      _
    $region11: #{my_cnn_forward.1} parent=1 // pred_check_branch
      %16 = sbr.rel (0) target = $region13
    $region12: #{my_cnn_forward.1} parent=1 // pred_region
      _
    $region13: #{my_cnn_forward.1} parent=1 // pred_fallthru
      _
    // Predicated region
    $region14: #{my_cnn_forward.1} parent=1 // pred_check
      _
    $region15: #{my_cnn_forward.1} parent=1 // pred_check_branch
      %18 = sbr.rel (0) target = $region17
    $region16: #{my_cnn_forward.1} parent=1 // pred_region
      _
    $region17: #{my_cnn_forward.1} parent=1 // pred_fallthru
      _
    // Predicated region
    $region18: #{my_cnn_forward.1} parent=1 // pred_check
      _
    $region19: #{my_cnn_forward.1} parent=1 // pred_check_branch
      %20 = sbr.rel (0) target = $region21
    $region20: #{my_cnn_forward.1} parent=1 // pred_region
      _
    $region21: #{my_cnn_forward.1} parent=1 // pred_fallthru
      _
    %v21 = vld [vmem:[%s0] sm:$0xff]
    %v22 = vld [vmem:[%s0 + $0x8] sm:$0xff]
    %v23 = vld [vmem:[%s0 + $0x10] sm:$0xff]
    %v24 = vld [vmem:[%s0 + $0x18] sm:$0xff]
    %v25 = vld [vmem:[%s0 + $0x20] sm:$0xff]
    %v26 = vld [vmem:[%s0 + $0x28] sm:$0xff]
    %v27 = vld [vmem:[%s0 + $0x30] sm:$0xff]
    %v28 = vld [vmem:[%s0 + $0x38] sm:$0xff]
    %v29 = vld [vmem:[%s0 + $0x40] sm:$0xff]
    %v30 = vld [vmem:[%s0 + $0x48] sm:$0xff]
    %v31 = vld [vmem:[%s0 + $0x50] sm:$0xff]
    %v32 = vld [vmem:[%s0 + $0x58] sm:$0xff]
    %v33 = vld [vmem:[%s0 + $0x60] sm:$0xff]
    %v34 = vld [vmem:[%s0 + $0x68] sm:$0xff]
    %v35 = vld [vmem:[%s0 + $0x70] sm:$0xff]
    %v36 = vld [vmem:[%s0 + $0x78] sm:$0xff]
    %v37 = vld [vmem:[%s1] sm:$0xff]
    %v38 = vld [vmem:[%s1 + $0x8] sm:$0xff]
    %v39 = vld [vmem:[%s1 + $0x10] sm:$0xff]
    %v40 = vld [vmem:[%s1 + $0x18] sm:$0xff]
    %v41 = vld [vmem:[%s1 + $0x20] sm:$0xff]
    %v42 = vld [vmem:[%s1 + $0x28] sm:$0xff]
    %v43 = vld [vmem:[%s1 + $0x30] sm:$0xff]
    %v44 = vld [vmem:[%s1 + $0x38] sm:$0xff]
    %v45 = vld [vmem:[%s1 + $0x40] sm:$0xff]
    %v46 = vld [vmem:[%s1 + $0x48] sm:$0xff]
    %v47 = vld [vmem:[%s1 + $0x50] sm:$0xff]
    %v48 = vld [vmem:[%s1 + $0x58] sm:$0xff]
    %v49 = vld [vmem:[%s1 + $0x60] sm:$0xff]
    %v50 = vld [vmem:[%s1 + $0x68] sm:$0xff]
    %v51 = vld [vmem:[%s1 + $0x70] sm:$0xff]
    %v52 = vld [vmem:[%s1 + $0x78] sm:$0xff]
    %v53 = vld [vmem:[%s1 + $0x80] sm:$0xff]
    %v54 = vld [vmem:[%s1 + $0x88] sm:$0xff]
    %v55 = vld [vmem:[%s1 + $0x90] sm:$0xff]
    %v56 = vld [vmem:[%s1 + $0x98] sm:$0xff]
    %v57 = vld [vmem:[%s1 + $0xa0] sm:$0xff]
    %v58 = vld [vmem:[%s1 + $0xa8] sm:$0xff]
    %v59 = vld [vmem:[%s1 + $0xb0] sm:$0xff]
    %v60 = vld [vmem:[%s1 + $0xb8] sm:$0xff]
    %v61 = vld [vmem:[%s1 + $0xc0] sm:$0xff]
    %v62 = vld [vmem:[%s1 + $0xc8] sm:$0xff]
    %v63 = vld [vmem:[%s1 + $0xd0] sm:$0xff]
    %v64 = vld [vmem:[%s1 + $0xd8] sm:$0xff]
    %v65 = vld [vmem:[%s1 + $0xe0] sm:$0xff]
    %v66 = vld [vmem:[%s1 + $0xe8] sm:$0xff]
    %v67 = vld [vmem:[%s1 + $0xf0] sm:$0xff]
    %v68 = vld [vmem:[%s1 + $0xf8] sm:$0xff]
    %v69 = vld [vmem:[%s1 + $0x100] sm:$0xff]
    %v70 = vld [vmem:[%s1 + $0x108] sm:$0xff]
    %v71 = vld [vmem:[%s1 + $0x110] sm:$0xff]
    %v72 = vld [vmem:[%s1 + $0x118] sm:$0xff]
    %v73 = vld [vmem:[%s1 + $0x120] sm:$0xff]
    %v74 = vld [vmem:[%s1 + $0x128] sm:$0xff]
    %v75 = vld [vmem:[%s1 + $0x130] sm:$0xff]
    %v76 = vld [vmem:[%s1 + $0x138] sm:$0xff]
    %v77 = vld [vmem:[%s1 + $0x140] sm:$0xff]
    %v78 = vld [vmem:[%s1 + $0x148] sm:$0xff]
    %v79 = vld [vmem:[%s1 + $0x150] sm:$0xff]
    %v80 = vld [vmem:[%s1 + $0x158] sm:$0xff]
    %v81 = vld [vmem:[%s1 + $0x160] sm:$0xff]
    %v82 = vld [vmem:[%s1 + $0x168] sm:$0xff]
    %v83 = vld [vmem:[%s1 + $0x170] sm:$0xff]
    %v84 = vld [vmem:[%s1 + $0x178] sm:$0xff]
    %v85 = vld [vmem:[%s1 + $0x180] sm:$0xff]
    %v86 = vld [vmem:[%s1 + $0x188] sm:$0xff]
    %v87 = vld [vmem:[%s1 + $0x190] sm:$0xff]
    %v88 = vld [vmem:[%s1 + $0x198] sm:$0xff]
    %v89 = vld [vmem:[%s1 + $0x1a0] sm:$0xff]
    %v90 = vld [vmem:[%s1 + $0x1a8] sm:$0xff]
    %v91 = vld [vmem:[%s1 + $0x1b0] sm:$0xff]
    %v92 = vld [vmem:[%s1 + $0x1b8] sm:$0xff]
    %v93 = vld [vmem:[%s1 + $0x1c0] sm:$0xff]
    %v94 = vld [vmem:[%s1 + $0x1c8] sm:$0xff]
    %v95 = vld [vmem:[%s1 + $0x1d0] sm:$0xff]
    %v96 = vld [vmem:[%s1 + $0x1d8] sm:$0xff]
    %v97 = vld [vmem:[%s1 + $0x1e0] sm:$0xff]
    %v98 = vld [vmem:[%s1 + $0x1e8] sm:$0xff]
    %v99 = vld [vmem:[%s1 + $0x1f0] sm:$0xff]
    %v100 = vld [vmem:[%s1 + $0x1f8] sm:$0xff]
    %v101 = vld [vmem:[%s1 + $0x200] sm:$0xff]
    %v102 = vld [vmem:[%s1 + $0x208] sm:$0xff]
    %v103 = vld [vmem:[%s1 + $0x210] sm:$0xff]
    %v104 = vld [vmem:[%s1 + $0x218] sm:$0xff]
    %v105 = vld [vmem:[%s1 + $0x220] sm:$0xff]
    %v106 = vld [vmem:[%s1 + $0x228] sm:$0xff]
    %v107 = vld [vmem:[%s1 + $0x230] sm:$0xff]
    %v108 = vld [vmem:[%s1 + $0x238] sm:$0xff]
    %v109 = vld [vmem:[%s1 + $0x240] sm:$0xff]
    %v110 = vld [vmem:[%s1 + $0x248] sm:$0xff]
    %v111 = vld [vmem:[%s1 + $0x250] sm:$0xff]
    %v112 = vld [vmem:[%s1 + $0x258] sm:$0xff]
    %v113 = vld [vmem:[%s1 + $0x260] sm:$0xff]
    %v114 = vld [vmem:[%s1 + $0x268] sm:$0xff]
    %v115 = vld [vmem:[%s1 + $0x270] sm:$0xff]
    %v116 = vld [vmem:[%s1 + $0x278] sm:$0xff]
    %v117 = vld [vmem:[%s1 + $0x280] sm:$0xff]
    %v118 = vld [vmem:[%s1 + $0x288] sm:$0xff]
    %v119 = vld [vmem:[%s1 + $0x290] sm:$0xff]
    %v120 = vld [vmem:[%s1 + $0x298] sm:$0xff]
    %v121 = vld [vmem:[%s1 + $0x2a0] sm:$0xff]
    %v122 = vld [vmem:[%s1 + $0x2a8] sm:$0xff]
    %v123 = vld [vmem:[%s1 + $0x2b0] sm:$0xff]
    %v124 = vld [vmem:[%s1 + $0x2b8] sm:$0xff]
    %v125 = vld [vmem:[%s1 + $0x2c0] sm:$0xff]
    %v126 = vld [vmem:[%s1 + $0x2c8] sm:$0xff]
    %v127 = vld [vmem:[%s1 + $0x2d0] sm:$0xff]
    %v128 = vld [vmem:[%s1 + $0x2d8] sm:$0xff]
    %v129 = vld [vmem:[%s1 + $0x2e0] sm:$0xff]
    %v130 = vld [vmem:[%s1 + $0x2e8] sm:$0xff]
    %v131 = vld [vmem:[%s1 + $0x2f0] sm:$0xff]
    %v132 = vld [vmem:[%s1 + $0x2f8] sm:$0xff]
    %v133 = vld [vmem:[%s1 + $0x300] sm:$0xff]
    %v134 = vld [vmem:[%s1 + $0x308] sm:$0xff]
    %v135 = vld [vmem:[%s1 + $0x310] sm:$0xff]
    %v136 = vld [vmem:[%s1 + $0x318] sm:$0xff]
    %v137 = vld [vmem:[%s1 + $0x320] sm:$0xff]
    %v138 = vld [vmem:[%s1 + $0x328] sm:$0xff]
    %v139 = vld [vmem:[%s1 + $0x330] sm:$0xff]
    %v140 = vld [vmem:[%s1 + $0x338] sm:$0xff]
    %v141 = vld [vmem:[%s1 + $0x340] sm:$0xff]
    %v142 = vld [vmem:[%s1 + $0x348] sm:$0xff]
    %v143 = vld [vmem:[%s1 + $0x350] sm:$0xff]
    %v144 = vld [vmem:[%s1 + $0x358] sm:$0xff]
    %v145 = vld [vmem:[%s1 + $0x360] sm:$0xff]
    %v146 = vld [vmem:[%s1 + $0x368] sm:$0xff]
    %v147 = vld [vmem:[%s1 + $0x370] sm:$0xff]
    %v148 = vld [vmem:[%s1 + $0x378] sm:$0xff]
    %v149 = vld [vmem:[%s1 + $0x380] sm:$0xf]
    %v150 = vld [vmem:[%s2] sm:$0x1]
    %v152 = vlaneseq
    %v153 = vshrl.u32 %v152, 7
    %v154 = vsub.s32 0, %v153
    %v155 = vrot.slane %v150, %v154
    %vm157 = vcmask 31744
    %v159 = vsel %vm157, %v28, 0
    %v162 = vsel %vm157, %v36, 0
    %vm164 = vcmask 1043456
    %v166 = vsel %vm164, %v149, 0
    %168 = vmatprep.subr.mxu0 0.0
    %169 = vmatpush1.msra.mxu0 %v37
    %170 = vmatprep.subr.mxu0 0.0
    %171 = vmatpush1.msra.mxu0 %v38
    %172 = vmatprep.subr.mxu0 0.0
    %173 = vmatpush1.msra.mxu0 %v39
    %174 = vmatprep.subr.mxu0 0.0
    %175 = vmatpush1.msra.mxu0 %v40
    %176 = vmatprep.subr.mxu0 0.0
    %177 = vmatpush1.msra.mxu0 %v41
    %178 = vmatprep.subr.mxu0 0.0
    %179 = vmatpush1.msra.mxu0 %v42
    %180 = vmatprep.subr.mxu0 0.0
    %181 = vmatpush1.msra.mxu0 %v43
    %182 = vmatprep.subr.mxu0 0.0
    %183 = vmatpush1.msra.mxu0 %v44
    %184 = vmatprep.subr.mxu0 0.0
    %185 = vmatpush1.msra.mxu0 %v45
    %186 = vmatprep.subr.mxu0 0.0
    %187 = vmatpush1.msra.mxu0 %v46
    %188 = vmatprep.subr.mxu0 0.0
    %189 = vmatpush1.msra.mxu0 %v47
    %190 = vmatprep.subr.mxu0 0.0
    %191 = vmatpush1.msra.mxu0 %v48
    %192 = vmatprep.subr.mxu0 0.0
    %193 = vmatpush1.msra.mxu0 %v49
    %194 = vmatprep.subr.mxu0 0.0
    %195 = vmatpush1.msra.mxu0 %v50
    %196 = vmatprep.subr.mxu0 0.0
    %197 = vmatpush1.msra.mxu0 %v51
    %198 = vmatprep.subr.mxu0 0.0
    %199 = vmatpush1.msra.mxu0 %v52
    %200 = vmatprep.subr.mxu0 0.0
    %201 = vmatpush1.msra.mxu0 %v53
    %202 = vmatprep.subr.mxu0 0.0
    %203 = vmatpush1.msra.mxu0 %v54
    %204 = vmatprep.subr.mxu0 0.0
    %205 = vmatpush1.msra.mxu0 %v55
    %206 = vmatprep.subr.mxu0 0.0
    %207 = vmatpush1.msra.mxu0 %v56
    %208 = vmatprep.subr.mxu0 0.0
    %209 = vmatpush1.msra.mxu0 %v57
    %210 = vmatprep.subr.mxu0 0.0
    %211 = vmatpush1.msra.mxu0 %v58
    %212 = vmatprep.subr.mxu0 0.0
    %213 = vmatpush1.msra.mxu0 %v59
    %214 = vmatprep.subr.mxu0 0.0
    %215 = vmatpush1.msra.mxu0 %v60
    %216 = vmatprep.subr.mxu0 0.0
    %217 = vmatpush1.msra.mxu0 %v61
    %218 = vmatprep.subr.mxu0 0.0
    %219 = vmatpush1.msra.mxu0 %v62
    %220 = vmatprep.subr.mxu0 0.0
    %221 = vmatpush1.msra.mxu0 %v63
    %222 = vmatprep.subr.mxu0 0.0
    %223 = vmatpush1.msra.mxu0 %v64
    %224 = vmatprep.subr.mxu0 0.0
    %225 = vmatpush1.msra.mxu0 %v65
    %226 = vmatprep.subr.mxu0 0.0
    %227 = vmatpush1.msra.mxu0 %v66
    %228 = vmatprep.subr.mxu0 0.0
    %229 = vmatpush1.msra.mxu0 %v67
    %230 = vmatprep.subr.mxu0 0.0
    %231 = vmatpush1.msra.mxu0 %v68
    %232 = vmatprep.mubr.f32.mxu0 %v22
    %233 = vmatmul.mubr.f32.gmra.mrb[0].mxu0 %v21
    %v234 = vpop.f32.mrb[0].mxu0
    %v235 = vadd.f32 %v155, %v234
    %v236 = vpop.f32.mrb[0].mxu0
    %237 = vmatprep.mubr.f32.mxu0 %v30
    %238 = vmatmul.mubr.f32.gmra.mrb[0].mxu0 %v29
    %v239 = vpop.f32.mrb[0].mxu0
    %v240 = vadd.f32 %v155, %v239
    %v241 = vpop.f32.mrb[0].mxu0
    %242 = vdwg.mxu0
    %243 = vmatprep.subr.mxu0 0.0
    %244 = vmatpush1.msra.mxu0 %v69
    %245 = vmatprep.subr.mxu0 0.0
    %246 = vmatpush1.msra.mxu0 %v70
    %247 = vmatprep.subr.mxu0 0.0
    %248 = vmatpush1.msra.mxu0 %v71
    %249 = vmatprep.subr.mxu0 0.0
    %250 = vmatpush1.msra.mxu0 %v72
    %251 = vmatprep.subr.mxu0 0.0
    %252 = vmatpush1.msra.mxu0 %v73
    %253 = vmatprep.subr.mxu0 0.0
    %254 = vmatpush1.msra.mxu0 %v74
    %255 = vmatprep.subr.mxu0 0.0
    %256 = vmatpush1.msra.mxu0 %v75
    %257 = vmatprep.subr.mxu0 0.0
    %258 = vmatpush1.msra.mxu0 %v76
    %259 = vmatprep.subr.mxu0 0.0
    %260 = vmatpush1.msra.mxu0 %v77
    %261 = vmatprep.subr.mxu0 0.0
    %262 = vmatpush1.msra.mxu0 %v78
    %263 = vmatprep.subr.mxu0 0.0
    %264 = vmatpush1.msra.mxu0 %v79
    %265 = vmatprep.subr.mxu0 0.0
    %266 = vmatpush1.msra.mxu0 %v80
    %267 = vmatprep.subr.mxu0 0.0
    %268 = vmatpush1.msra.mxu0 %v81
    %269 = vmatprep.subr.mxu0 0.0
    %270 = vmatpush1.msra.mxu0 %v82
    %271 = vmatprep.subr.mxu0 0.0
    %272 = vmatpush1.msra.mxu0 %v83
    %273 = vmatprep.subr.mxu0 0.0
    %274 = vmatpush1.msra.mxu0 %v84
    %275 = vmatprep.subr.mxu0 0.0
    %276 = vmatpush1.msra.mxu0 %v85
    %277 = vmatprep.subr.mxu0 0.0
    %278 = vmatpush1.msra.mxu0 %v86
    %279 = vmatprep.subr.mxu0 0.0
    %280 = vmatpush1.msra.mxu0 %v87
    %281 = vmatprep.subr.mxu0 0.0
    %282 = vmatpush1.msra.mxu0 %v88
    %283 = vmatprep.subr.mxu0 0.0
    %284 = vmatpush1.msra.mxu0 %v89
    %285 = vmatprep.subr.mxu0 0.0
    %286 = vmatpush1.msra.mxu0 %v90
    %287 = vmatprep.subr.mxu0 0.0
    %288 = vmatpush1.msra.mxu0 %v91
    %289 = vmatprep.subr.mxu0 0.0
    %290 = vmatpush1.msra.mxu0 %v92
    %291 = vmatprep.subr.mxu0 0.0
    %292 = vmatpush1.msra.mxu0 %v93
    %293 = vmatprep.subr.mxu0 0.0
    %294 = vmatpush1.msra.mxu0 %v94
    %295 = vmatprep.subr.mxu0 0.0
    %296 = vmatpush1.msra.mxu0 %v95
    %297 = vmatprep.subr.mxu0 0.0
    %298 = vmatpush1.msra.mxu0 %v96
    %299 = vmatprep.subr.mxu0 0.0
    %300 = vmatpush1.msra.mxu0 %v97
    %301 = vmatprep.subr.mxu0 0.0
    %302 = vmatpush1.msra.mxu0 %v98
    %303 = vmatprep.subr.mxu0 0.0
    %304 = vmatpush1.msra.mxu0 %v99
    %305 = vmatprep.subr.mxu0 0.0
    %306 = vmatpush1.msra.mxu0 %v100
    %307 = vmatprep.mubr.f32.mxu0 %v24
    %308 = vmatmul.mubr.f32.gmra.mrb[0].mxu0 %v23
    %v309 = vpop.f32.mrb[0].mxu0
    %v310 = vadd.f32 %v235, %v309
    %v311 = vpop.f32.mrb[0].mxu0
    %312 = vmatprep.mubr.f32.mxu0 %v32
    %313 = vmatmul.mubr.f32.gmra.mrb[0].mxu0 %v31
    %v314 = vpop.f32.mrb[0].mxu0
    %v315 = vadd.f32 %v240, %v314
    %v316 = vpop.f32.mrb[0].mxu0
    %317 = vdwg.mxu0
    %318 = vmatprep.subr.mxu0 0.0
    %319 = vmatpush1.msra.mxu0 %v101
    %320 = vmatprep.subr.mxu0 0.0
    %321 = vmatpush1.msra.mxu0 %v102
    %322 = vmatprep.subr.mxu0 0.0
    %323 = vmatpush1.msra.mxu0 %v103
    %324 = vmatprep.subr.mxu0 0.0
    %325 = vmatpush1.msra.mxu0 %v104
    %326 = vmatprep.subr.mxu0 0.0
    %327 = vmatpush1.msra.mxu0 %v105
    %328 = vmatprep.subr.mxu0 0.0
    %329 = vmatpush1.msra.mxu0 %v106
    %330 = vmatprep.subr.mxu0 0.0
    %331 = vmatpush1.msra.mxu0 %v107
    %332 = vmatprep.subr.mxu0 0.0
    %333 = vmatpush1.msra.mxu0 %v108
    %334 = vmatprep.subr.mxu0 0.0
    %335 = vmatpush1.msra.mxu0 %v109
    %336 = vmatprep.subr.mxu0 0.0
    %337 = vmatpush1.msra.mxu0 %v110
    %338 = vmatprep.subr.mxu0 0.0
    %339 = vmatpush1.msra.mxu0 %v111
    %340 = vmatprep.subr.mxu0 0.0
    %341 = vmatpush1.msra.mxu0 %v112
    %342 = vmatprep.subr.mxu0 0.0
    %343 = vmatpush1.msra.mxu0 %v113
    %344 = vmatprep.subr.mxu0 0.0
    %345 = vmatpush1.msra.mxu0 %v114
    %346 = vmatprep.subr.mxu0 0.0
    %347 = vmatpush1.msra.mxu0 %v115
    %348 = vmatprep.subr.mxu0 0.0
    %349 = vmatpush1.msra.mxu0 %v116
    %350 = vmatprep.subr.mxu0 0.0
    %351 = vmatpush1.msra.mxu0 %v117
    %352 = vmatprep.subr.mxu0 0.0
    %353 = vmatpush1.msra.mxu0 %v118
    %354 = vmatprep.subr.mxu0 0.0
    %355 = vmatpush1.msra.mxu0 %v119
    %356 = vmatprep.subr.mxu0 0.0
    %357 = vmatpush1.msra.mxu0 %v120
    %358 = vmatprep.subr.mxu0 0.0
    %359 = vmatpush1.msra.mxu0 %v121
    %360 = vmatprep.subr.mxu0 0.0
    %361 = vmatpush1.msra.mxu0 %v122
    %362 = vmatprep.subr.mxu0 0.0
    %363 = vmatpush1.msra.mxu0 %v123
    %364 = vmatprep.subr.mxu0 0.0
    %365 = vmatpush1.msra.mxu0 %v124
    %366 = vmatprep.subr.mxu0 0.0
    %367 = vmatpush1.msra.mxu0 %v125
    %368 = vmatprep.subr.mxu0 0.0
    %369 = vmatpush1.msra.mxu0 %v126
    %370 = vmatprep.subr.mxu0 0.0
    %371 = vmatpush1.msra.mxu0 %v127
    %372 = vmatprep.subr.mxu0 0.0
    %373 = vmatpush1.msra.mxu0 %v128
    %374 = vmatprep.subr.mxu0 0.0
    %375 = vmatpush1.msra.mxu0 %v129
    %376 = vmatprep.subr.mxu0 0.0
    %377 = vmatpush1.msra.mxu0 %v130
    %378 = vmatprep.subr.mxu0 0.0
    %379 = vmatpush1.msra.mxu0 %v131
    %380 = vmatprep.subr.mxu0 0.0
    %381 = vmatpush1.msra.mxu0 %v132
    %382 = vmatprep.mubr.f32.mxu0 %v26
    %383 = vmatmul.mubr.f32.gmra.mrb[0].mxu0 %v25
    %v384 = vpop.f32.mrb[0].mxu0
    %v385 = vadd.f32 %v310, %v384
    %v386 = vpop.f32.mrb[0].mxu0
    %387 = vmatprep.mubr.f32.mxu0 %v34
    %388 = vmatmul.mubr.f32.gmra.mrb[0].mxu0 %v33
    %v389 = vpop.f32.mrb[0].mxu0
    %v390 = vadd.f32 %v315, %v389
    %v391 = vpop.f32.mrb[0].mxu0
    %392 = vdwg.mxu0
    %393 = vmatprep.subr.mxu0 0.0
    %394 = vmatpush1.msra.mxu0 %v133
    %395 = vmatprep.subr.mxu0 0.0
    %396 = vmatpush1.msra.mxu0 %v134
    %397 = vmatprep.subr.mxu0 0.0
    %398 = vmatpush1.msra.mxu0 %v135
    %399 = vmatprep.subr.mxu0 0.0
    %400 = vmatpush1.msra.mxu0 %v136
    %401 = vmatprep.subr.mxu0 0.0
    %402 = vmatpush1.msra.mxu0 %v137
    %403 = vmatprep.subr.mxu0 0.0
    %404 = vmatpush1.msra.mxu0 %v138
    %405 = vmatprep.subr.mxu0 0.0
    %406 = vmatpush1.msra.mxu0 %v139
    %407 = vmatprep.subr.mxu0 0.0
    %408 = vmatpush1.msra.mxu0 %v140
    %409 = vmatprep.subr.mxu0 0.0
    %410 = vmatpush1.msra.mxu0 %v141
    %411 = vmatprep.subr.mxu0 0.0
    %412 = vmatpush1.msra.mxu0 %v142
    %413 = vmatprep.subr.mxu0 0.0
    %414 = vmatpush1.msra.mxu0 %v143
    %415 = vmatprep.subr.mxu0 0.0
    %416 = vmatpush1.msra.mxu0 %v144
    %417 = vmatprep.subr.mxu0 0.0
    %418 = vmatpush1.msra.mxu0 %v145
    %419 = vmatprep.subr.mxu0 0.0
    %420 = vmatpush1.msra.mxu0 %v146
    %421 = vmatprep.subr.mxu0 0.0
    %422 = vmatpush1.msra.mxu0 %v147
    %423 = vmatprep.subr.mxu0 0.0
    %424 = vmatpush1.msra.mxu0 %v148
    %425 = vmatprep.subr.mxu0 0.0
    %426 = vmatpush1.msra.mxu0 %v166
    %427 = vmatprep.subr.mxu0 0.0
    %428 = vmatpush1.msra.mxu0 0.0
    %429 = vmatprep.subr.mxu0 0.0
    %430 = vmatpush1.msra.mxu0 0.0
    %431 = vmatprep.subr.mxu0 0.0
    %432 = vmatpush1.msra.mxu0 0.0
    %433 = vmatprep.subr.mxu0 0.0
    %434 = vmatpush1.msra.mxu0 0.0
    %435 = vmatprep.subr.mxu0 0.0
    %436 = vmatpush1.msra.mxu0 0.0
    %437 = vmatprep.subr.mxu0 0.0
    %438 = vmatpush1.msra.mxu0 0.0
    %439 = vmatprep.subr.mxu0 0.0
    %440 = vmatpush1.msra.mxu0 0.0
    %441 = vmatprep.subr.mxu0 0.0
    %442 = vmatpush1.msra.mxu0 0.0
    %443 = vmatprep.subr.mxu0 0.0
    %444 = vmatpush1.msra.mxu0 0.0
    %445 = vmatprep.subr.mxu0 0.0
    %446 = vmatpush1.msra.mxu0 0.0
    %447 = vmatprep.subr.mxu0 0.0
    %448 = vmatpush1.msra.mxu0 0.0
    %449 = vmatprep.subr.mxu0 0.0
    %450 = vmatpush1.msra.mxu0 0.0
    %451 = vmatprep.subr.mxu0 0.0
    %452 = vmatpush1.msra.mxu0 0.0
    %453 = vmatprep.subr.mxu0 0.0
    %454 = vmatpush1.msra.mxu0 0.0
    %455 = vmatprep.subr.mxu0 0.0
    %456 = vmatpush1.msra.mxu0 0.0
    %457 = vmatprep.mubr.f32.mxu0 %v159
    %458 = vmatmul.mubr.f32.gmra.mrb[0].mxu0 %v27
    %v459 = vpop.f32.mrb[0].mxu0
    %v460 = vadd.f32 %v385, %v459
    %v461 = vpop.f32.mrb[0].mxu0
    %462 = vmatprep.mubr.f32.mxu0 %v162
    %463 = vmatmul.mubr.f32.gmra.mrb[0].mxu0 %v35
    %v464 = vpop.f32.mrb[0].mxu0
    %v465 = vadd.f32 %v390, %v464
    %v466 = vpop.f32.mrb[0].mxu0
    %467 = vdwg.mxu0
    %v468 = vmax.f32 %v460, 0.0
    %v469 = vmax.f32 %v465, 0.0
    %v470 = vrot.slane %v468, 4
    %v471 = vmax.f32 %v468, %v470
    %v472 = vrot.slane %v471, 2
    %v473 = vmax.f32 %v471, %v472
    %v474 = vrot.slane %v473, 1
    %v475 = vmax.f32 %v473, %v474
    %v476 = vrot.slane %v469, 4
    %v477 = vmax.f32 %v469, %v476
    %v478 = vrot.slane %v477, 2
    %v479 = vmax.f32 %v477, %v478
    %v480 = vrot.slane %v479, 1
    %v481 = vmax.f32 %v479, %v480
    %v482 = vld [vmem:[%s3] sm:$0xff]
    %v483 = vld [vmem:[%s3 + $0x8] sm:$0xff]
    %v484 = vld [vmem:[%s3 + $0x10] sm:$0xff]
    %v485 = vld [vmem:[%s3 + $0x18] sm:$0xff]
    %v486 = vld [vmem:[%s3 + $0x20] sm:$0xff]
    %v487 = vld [vmem:[%s3 + $0x28] sm:$0xff]
    %v488 = vld [vmem:[%s3 + $0x30] sm:$0xff]
    %v489 = vld [vmem:[%s3 + $0x38] sm:$0xff]
    %v490 = vld [vmem:[%s3 + $0x40] sm:$0xff]
    %v491 = vld [vmem:[%s3 + $0x48] sm:$0xff]
    %v492 = vld [vmem:[%s3 + $0x50] sm:$0xff]
    %v493 = vld [vmem:[%s3 + $0x58] sm:$0xff]
    %v494 = vld [vmem:[%s3 + $0x60] sm:$0xff]
    %v495 = vld [vmem:[%s3 + $0x68] sm:$0xff]
    %v496 = vld [vmem:[%s3 + $0x70] sm:$0xff]
    %v497 = vld [vmem:[%s3 + $0x78] sm:$0xff]
    %v498 = vld [vmem:[%s4] sm:$0x1]
    %v500 = vlaneseq
    %v501 = vshrl.u32 %v500, 7
    %v502 = vsub.s32 0, %v501
    %v503 = vrot.slane %v498, %v502
    %vm507 = vcmask 1041409
    %v508 = vsel %vm507, %v481, %v475
    %510 = vmatprep.subr.mxu0 0.0
    %511 = vmatpush1.msra.mxu0 %v482
    %512 = vmatprep.subr.mxu0 0.0
    %513 = vmatpush1.msra.mxu0 %v483
    %514 = vmatprep.subr.mxu0 0.0
    %515 = vmatpush1.msra.mxu0 %v484
    %516 = vmatprep.subr.mxu0 0.0
    %517 = vmatpush1.msra.mxu0 %v485
    %518 = vmatprep.subr.mxu0 0.0
    %519 = vmatpush1.msra.mxu0 %v486
    %520 = vmatprep.subr.mxu0 0.0
    %521 = vmatpush1.msra.mxu0 %v487
    %522 = vmatprep.subr.mxu0 0.0
    %523 = vmatpush1.msra.mxu0 %v488
    %524 = vmatprep.subr.mxu0 0.0
    %525 = vmatpush1.msra.mxu0 %v489
    %526 = vmatprep.subr.mxu0 0.0
    %527 = vmatpush1.msra.mxu0 %v490
    %528 = vmatprep.subr.mxu0 0.0
    %529 = vmatpush1.msra.mxu0 %v491
    %530 = vmatprep.subr.mxu0 0.0
    %531 = vmatpush1.msra.mxu0 %v492
    %532 = vmatprep.subr.mxu0 0.0
    %533 = vmatpush1.msra.mxu0 %v493
    %534 = vmatprep.subr.mxu0 0.0
    %535 = vmatpush1.msra.mxu0 %v494
    %536 = vmatprep.subr.mxu0 0.0
    %537 = vmatpush1.msra.mxu0 %v495
    %538 = vmatprep.subr.mxu0 0.0
    %539 = vmatpush1.msra.mxu0 %v496
    %540 = vmatprep.subr.mxu0 0.0
    %541 = vmatpush1.msra.mxu0 %v497
    %542 = vmatprep.subr.mxu0 0.0
    %543 = vmatpush1.msra.mxu0 0.0
    %544 = vmatprep.subr.mxu0 0.0
    %545 = vmatpush1.msra.mxu0 0.0
    %546 = vmatprep.subr.mxu0 0.0
    %547 = vmatpush1.msra.mxu0 0.0
    %548 = vmatprep.subr.mxu0 0.0
    %549 = vmatpush1.msra.mxu0 0.0
    %550 = vmatprep.subr.mxu0 0.0
    %551 = vmatpush1.msra.mxu0 0.0
    %552 = vmatprep.subr.mxu0 0.0
    %553 = vmatpush1.msra.mxu0 0.0
    %554 = vmatprep.subr.mxu0 0.0
    %555 = vmatpush1.msra.mxu0 0.0
    %556 = vmatprep.subr.mxu0 0.0
    %557 = vmatpush1.msra.mxu0 0.0
    %558 = vmatprep.subr.mxu0 0.0
    %559 = vmatpush1.msra.mxu0 0.0
    %560 = vmatprep.subr.mxu0 0.0
    %561 = vmatpush1.msra.mxu0 0.0
    %562 = vmatprep.subr.mxu0 0.0
    %563 = vmatpush1.msra.mxu0 0.0
    %564 = vmatprep.subr.mxu0 0.0
    %565 = vmatpush1.msra.mxu0 0.0
    %566 = vmatprep.subr.mxu0 0.0
    %567 = vmatpush1.msra.mxu0 0.0
    %568 = vmatprep.subr.mxu0 0.0
    %569 = vmatpush1.msra.mxu0 0.0
    %570 = vmatprep.subr.mxu0 0.0
    %571 = vmatpush1.msra.mxu0 0.0
    %572 = vmatprep.subr.mxu0 0.0
    %573 = vmatpush1.msra.mxu0 0.0
    %574 = vmatprep.mubr.f32.mxu0 0.0
    %575 = vmatmul.mubr.f32.gmra.mrb[0].mxu0 %v508
    %v576 = vpop.f32.mrb[0].mxu0
    %v577 = vadd.f32 %v503, %v576
    %v578 = vpop.f32.mrb[0].mxu0
    %579 = vdwg.mxu0
    %580 = vst [vmem:[#allocation2] sm:$0x3] %v577
    // Predicated region
    $region22: #{my_cnn_forward.1} parent=1 // pred_check
      _
    $region23: #{my_cnn_forward.1} parent=1 // pred_check_branch
      %582 = sbr.rel (0) target = $region25
    $region24: #{my_cnn_forward.1} parent=1 // pred_region
      %s584 = ssub.s32 32, 32
      %585 = vsyncadd [#allocation3], %s584
      %s587 = sshll.u32 [#allocation2], 4
      %s588 = int_to_ptr.vmem [resolvable:$true] %s587
      %590 = dma.vmem_to_hbm [thread:$0]  %s588, 32, %s5, [#allocation3]
    $region25: #{my_cnn_forward.1} parent=1 // pred_fallthru
      _
    // Predicated region
    $region26: #{my_cnn_forward.1} parent=1 // pred_check
      _
    $region27: #{my_cnn_forward.1} parent=1 // pred_check_branch
      %592 = sbr.rel (0) target = $region29
    $region28: #{my_cnn_forward.1} parent=1 // pred_region
      %593 = dma.done [#allocation3], 32
    $region29: #{my_cnn_forward.1} parent=1 // pred_fallthru
      _
    %594 = vsyncpa [#allocation3], 1

</llo_original>
